<compile_context>
chip_gen: v7x
topology: tpu7x:2x2x1
jax: 0.10.0
libtpu: 0.0.40
codegen_flags: <defaults>
</compile_context>

<pallas_src>
import jax
import jax.numpy as jnp
from jax.experimental import pallas as pl
from jax.experimental.pallas import tpu as pltpu


def detect_loss_kernel(yt_ref, yp_ref, o_ref):
    # o_ref block (1, 8, 128) is resident across the inner ("arbitrary")
    # reduction axis -> it is the accumulator.
    @pl.when(pl.program_id(1) == 0)
    def _init():
        o_ref[...] = jnp.zeros_like(o_ref)

    # [4, TG, 128]; the cast is a no-op for f32 inputs, required if bf16.
    d = yt_ref[...].astype(jnp.float32) - yp_ref[...].astype(jnp.float32)
    d0, d1, d2, d3 = d[0], d[1], d[2], d[3]            # each [TG, 128]

    # Per-box loss, lane-dense, pure VPU (no [N,1] slices, no masking).
    wd = d2 - d0
    hd = d3 - d1
    contrib = d0 * d0 + d1 * d1 + wd * wd + hd * hd    # [TG, 128]

    # Fold [TG,128] -> [1,8,128] via element-wise vreg adds (still VPU work);
    # the single cross-lane reduce happens once, outside the kernel.
    tg = contrib.shape[0]
    o_ref[...] += contrib.reshape(1, tg // 8, 8, 128).sum(axis=1)


def detect_loss(y_true: jax.Array, yhat: jax.Array,
                *, max_tile_boxes: int = 131072,
                num_partials: int = 2) -> jax.Array:
    """Pallas TPU implementation of DetectLoss.forward. Returns an f32 scalar."""
    assert y_true.shape == yhat.shape and y_true.shape[-1] == 4
    n = y_true.shape[0]
    p = num_partials

    # Boxes per grid step: multiple of 1024 (= 8 sublanes * 128 lanes of f32).
    # max_tile_boxes=131072 -> 2 MiB per input block, 8 MiB double-buffered:
    # comfortably inside the scoped VMEM limit on v5e/v6e/v7x.
    per_partial = -(-max(n, 1) // p)
    tile_boxes = min(max_tile_boxes, -(-per_partial // 1024) * 1024)
    steps = -(-max(n, 1) // (p * tile_boxes))
    n_pad = p * steps * tile_boxes
    tg = tile_boxes // 128            # 128-lane groups per tile (multiple of 8)
    g = n_pad // 128                  # total 128-lane groups

    def to_lane_dense(x):
        # Zero-padded boxes contribute exactly 0 to the loss (d == 0).
        x = jnp.pad(x, ((0, n_pad - n), (0, 0)))
        return x.T.reshape(4, g, 128)   # boxes on the 128-lane axis

    yt = to_lane_dense(y_true)
    yp = to_lane_dense(yhat)

    in_spec = pl.BlockSpec((4, tg, 128), lambda pi, i: (0, pi * steps + i, 0))

    partials = pl.pallas_call(
        detect_loss_kernel,
        out_shape=jax.ShapeDtypeStruct((p, 8, 128), jnp.float32),
        grid=(p, steps),
        in_specs=[in_spec, in_spec],
        out_specs=pl.BlockSpec((1, 8, 128), lambda pi, i: (pi, 0, 0)),
        compiler_params=pltpu.CompilerParams(
            dimension_semantics=("parallel", "arbitrary"),
            vmem_limit_bytes=32 * 1024 * 1024,
        ),
        cost_estimate=pl.CostEstimate(
            flops=10 * n_pad,
            transcendentals=0,
            bytes_accessed=2 * n_pad * 4 * 4 + p * 8 * 128 * 4,
        ),
    )(yt, yp)

    # Tiny final cross-lane reduction of the partial sums (2*8*128 floats).
    return jnp.sum(partials)


def _reference(y_true, yhat):
    delta_coord = jnp.sum(jnp.square(y_true[:, :2] - yhat[:, :2]))
    h_true = y_true[:, 3] - y_true[:, 1]
    w_true = y_true[:, 2] - y_true[:, 0]
    h_pred = yhat[:, 3] - yhat[:, 1]
    w_pred = yhat[:, 2] - yhat[:, 0]
    delta_size = jnp.sum(jnp.square(w_true - w_pred) + jnp.square(h_true - h_pred))
    return delta_coord + delta_size


if __name__ == "__main__":
    key = jax.random.PRNGKey(0)
    k1, k2, k3, k4 = jax.random.split(key, 4)

    # Small shape consistent with the module: N boxes x 4 coords.
    n_small = 8
    y_true = jax.random.uniform(k1, (n_small, 4), dtype=jnp.float32)
    yhat = jax.random.uniform(k2, (n_small, 4), dtype=jnp.float32)
    loss = detect_loss(y_true, yhat)
    jax.block_until_ready(loss)
    ref = _reference(y_true, yhat)
    assert jnp.allclose(loss, ref, rtol=1e-5, atol=1e-5), (loss, ref)

    # Second check: non-multiple N exercising padding + both parallel partials.
    n_big = 1000
    y_true2 = jax.random.uniform(k3, (n_big, 4), dtype=jnp.float32)
    yhat2 = jax.random.uniform(k4, (n_big, 4), dtype=jnp.float32)
    loss2 = detect_loss(y_true2, yhat2)
    jax.block_until_ready(loss2)
    ref2 = _reference(y_true2, yhat2)
    assert jnp.allclose(loss2, ref2, rtol=1e-4, atol=1e-4), (loss2, ref2)

    print("KERNEL_OK")
</pallas_src>

<mosaic_0001>
module attributes {stable_mosaic.version = 11 : i64} {
  func.func @detect_loss_kernel(%arg0: i32, %arg1: i32, %arg2: memref<4x8x128xf32, #tpu.memory_space<vmem>>, %arg3: memref<4x8x128xf32, #tpu.memory_space<vmem>>, %arg4: memref<1x8x128xf32, #tpu.memory_space<vmem>>) attributes {dimension_semantics = [#tpu.dimension_semantics<parallel>, #tpu.dimension_semantics<arbitrary>], iteration_bounds = array<i64: 2, 1>, scalar_prefetch = 0 : i64, scratch_operands = 0 : i64, tpu.core_type = #tpu.core_type<tc>, window_params = [{transform_indices = @transform_0, window_bounds = array<i64: 4, 8, 128>}, {transform_indices = @transform_1, window_bounds = array<i64: 4, 8, 128>}, {transform_indices = @transform_2, window_bounds = array<i64: 1, 8, 128>}]} {
    %c0_i32 = arith.constant 0 : i32
    %0 = arith.cmpi eq, %arg1, %c0_i32 : i32
    %1 = arith.extui %0 : i1 to i32
    %c0_i32_0 = arith.constant 0 : i32
    %2 = arith.cmpi ne, %1, %c0_i32_0 : i32
    scf.if %2 {
      %cst_12 = arith.constant 0.000000e+00 : f32
      %28 = vector.broadcast %cst_12 : f32 to vector<1x8x128xf32>
      %c0_13 = arith.constant 0 : index
      %c0_14 = arith.constant 0 : index
      %c0_15 = arith.constant 0 : index
      %29 = vector.load %arg4[%c0_13, %c0_14, %c0_15] : memref<1x8x128xf32, #tpu.memory_space<vmem>>, vector<1x8x128xf32>
      tpu.vector_store %arg4[%c0_13, %c0_14, %c0_15], %28 {strides = array<i32>} : memref<1x8x128xf32, #tpu.memory_space<vmem>>, vector<1x8x128xf32>,
    } else {
    }
    %c0 = arith.constant 0 : index
    %c0_1 = arith.constant 0 : index
    %c0_2 = arith.constant 0 : index
    %3 = vector.load %arg2[%c0, %c0_1, %c0_2] : memref<4x8x128xf32, #tpu.memory_space<vmem>>, vector<4x8x128xf32>
    %c0_3 = arith.constant 0 : index
    %c0_4 = arith.constant 0 : index
    %c0_5 = arith.constant 0 : index
    %4 = vector.load %arg3[%c0_3, %c0_4, %c0_5] : memref<4x8x128xf32, #tpu.memory_space<vmem>>, vector<4x8x128xf32>
    %5 = arith.subf %3, %4 : vector<4x8x128xf32>
    %6 = vector.extract_strided_slice %5 {offsets = [0, 0, 0], sizes = [1, 8, 128], strides = [1, 1, 1]} : vector<4x8x128xf32> to vector<1x8x128xf32>
    %7 = vector.shape_cast %6 : vector<1x8x128xf32> to vector<8x128xf32>
    %8 = vector.extract_strided_slice %5 {offsets = [1, 0, 0], sizes = [1, 8, 128], strides = [1, 1, 1]} : vector<4x8x128xf32> to vector<1x8x128xf32>
    %9 = vector.shape_cast %8 : vector<1x8x128xf32> to vector<8x128xf32>
    %10 = vector.extract_strided_slice %5 {offsets = [2, 0, 0], sizes = [1, 8, 128], strides = [1, 1, 1]} : vector<4x8x128xf32> to vector<1x8x128xf32>
    %11 = vector.shape_cast %10 : vector<1x8x128xf32> to vector<8x128xf32>
    %12 = vector.extract_strided_slice %5 {offsets = [3, 0, 0], sizes = [1, 8, 128], strides = [1, 1, 1]} : vector<4x8x128xf32> to vector<1x8x128xf32>
    %13 = vector.shape_cast %12 : vector<1x8x128xf32> to vector<8x128xf32>
    %14 = arith.subf %11, %7 : vector<8x128xf32>
    %15 = arith.subf %13, %9 : vector<8x128xf32>
    %16 = arith.mulf %7, %7 : vector<8x128xf32>
    %17 = arith.mulf %9, %9 : vector<8x128xf32>
    %18 = arith.addf %16, %17 : vector<8x128xf32>
    %19 = arith.mulf %14, %14 : vector<8x128xf32>
    %20 = arith.addf %18, %19 : vector<8x128xf32>
    %21 = arith.mulf %15, %15 : vector<8x128xf32>
    %22 = arith.addf %20, %21 : vector<8x128xf32>
    %c0_6 = arith.constant 0 : index
    %c0_7 = arith.constant 0 : index
    %c0_8 = arith.constant 0 : index
    %23 = vector.load %arg4[%c0_6, %c0_7, %c0_8] : memref<1x8x128xf32, #tpu.memory_space<vmem>>, vector<1x8x128xf32>
    %24 = vector.shape_cast %22 : vector<8x128xf32> to vector<1x1x8x128xf32>
    %cst = arith.constant dense<0.000000e+00> : vector<1x8x128xf32>
    %25 = vector.multi_reduction <add>, %24, %cst [1] : vector<1x1x8x128xf32> to vector<1x8x128xf32>
    %26 = arith.addf %23, %25 : vector<1x8x128xf32>
    %c0_9 = arith.constant 0 : index
    %c0_10 = arith.constant 0 : index
    %c0_11 = arith.constant 0 : index
    %27 = vector.load %arg4[%c0_9, %c0_10, %c0_11] : memref<1x8x128xf32, #tpu.memory_space<vmem>>, vector<1x8x128xf32>
    tpu.vector_store %arg4[%c0_9, %c0_10, %c0_11], %26 {strides = array<i32>} : memref<1x8x128xf32, #tpu.memory_space<vmem>>, vector<1x8x128xf32>,
    return
  }
  func.func @transform_0(%arg0: i32, %arg1: i32) -> (i32, i32, i32) {
    %c1_i32 = arith.constant 1 : i32
    %0 = arith.muli %arg0, %c1_i32 : i32
    %1 = arith.addi %0, %arg1 : i32
    %c0_i32 = arith.constant 0 : i32
    %c0_i32_0 = arith.constant 0 : i32
    %c0_i32_1 = arith.constant 0 : i32
    return %c0_i32, %1, %c0_i32_0 : i32, i32, i32
  }
  func.func @transform_1(%arg0: i32, %arg1: i32) -> (i32, i32, i32) {
    %c1_i32 = arith.constant 1 : i32
    %0 = arith.muli %arg0, %c1_i32 : i32
    %1 = arith.addi %0, %arg1 : i32
    %c0_i32 = arith.constant 0 : i32
    %c0_i32_0 = arith.constant 0 : i32
    %c0_i32_1 = arith.constant 0 : i32
    return %c0_i32, %1, %c0_i32_0 : i32, i32, i32
  }
  func.func @transform_2(%arg0: i32, %arg1: i32) -> (i32, i32, i32) {
    %c0_i32 = arith.constant 0 : i32
    %c0_i32_0 = arith.constant 0 : i32
    %c0_i32_1 = arith.constant 0 : i32
    return %arg0, %c0_i32, %c0_i32_0 : i32, i32, i32
  }
}

</mosaic_0001>

<llo_original>
// kernel: tpu_custom_call.1
$region0: #{tpu_custom_call.1}
  #allocation0 [shape = 'u32[]', space=smem, size = 0x4, offset = 0x4, fixed_abs, tag = 'smem constant byte address 0x4 - core index']
  #allocation1 [shape = 'u32[144,128]{1,0:T(1,128)}', space=vmem, size = 0x12000, scoped, tag = 'internal scratch']
  %s0 = inlined_call_operand.hbm [shape: f32[4,16,128], index: 0, kind: input, shape index: {}]
  %s1 = inlined_call_operand.hbm [shape: f32[4,16,128], index: 1, kind: input, shape index: {}]
  %s2 = inlined_call_operand.hbm [shape: f32[2,8,128], index: 2, kind: output, shape index: {}]
  %s3 = sld [smem:[#allocation0]]
  $region53: #{tpu_custom_call.1} parent=0
    _
  %s5 = ssub.s32 1, %s3
  %s6 = scalar_select 0, %s5, %s3
  $region1: #{tpu_custom_call.1} parent=0
    #allocation2 [shape = 'u8[32768]{0}', space=vmem, size = 0x8000, scoped, tag = 'input window, operand 0']
    #allocation3 [shape = 's32[2]{0}', space=sflag, size = 0x8, scoped, tag = 'scoped memory for tpu_custom_call.1']
    #allocation4 [shape = 's32[2]{0}', space=sflag, size = 0x8, scoped, tag = 'scoped memory for tpu_custom_call.1']
    #allocation5 [shape = 'u8[32768]{0}', space=vmem, size = 0x8000, scoped, tag = 'input window, operand 1']
    #allocation6 [shape = 's32[2]{0}', space=sflag, size = 0x8, scoped, tag = 'scoped memory for tpu_custom_call.1']
    #allocation7 [shape = 'u8[8192]{0}', space=vmem, size = 0x2000, scoped, tag = 'output window, operand 0']
    %7 = vsyncpa [#allocation3], 0
    %s8 = scalar_lea.sflag [#allocation3], 1
    %9 = vsyncpa %s8, 0
    %10 = vsyncpa [#allocation6], 0
    %s11 = scalar_lea.sflag [#allocation6], 1
    %12 = vsyncpa %s11, 0
    %13 = vsyncpa [#allocation4], 0
    %s14 = scalar_lea.sflag [#allocation4], 1
    %15 = vsyncpa %s14, 0
    loop: start=0, step=1, limit=4
    $region2: #{tpu_custom_call.1} parent=1 // loop_pre_header
      _
    $region3: #{tpu_custom_call.1} parent=1 // loop_header
      %s17 = sphi 0, %s21
      %p18 = scmp.ge.s32.totalorder %s17, 4
      %s24 = sphi 0, %s36
      %s25 = sphi 0, %s32
      %s26 = sphi 0, %s24
      %s27 = sphi 0, %s25
      %s28 = sphi 0, %s26
      %s29 = sphi 0, %s27
      %s41 = sphi 0, %s43
      %s44 = sphi 0, %s41
      %s45 = sphi 0, %s44
      %s61 = sphi 0, %s45
      %s69 = sphi 0, %s71
      %s72 = sphi 0, %s69
      %s73 = sphi 0, %s72
      %s89 = sphi 0, %s73
      %s95 = sphi 0, %s97
      %s98 = sphi 0, %s95
      %s99 = sphi 0, %s98
      %s115 = sphi 0, %s99
    $region4: #{tpu_custom_call.1} parent=1 // loop_header_branch
      %20 = sbr.rel (%p18) target = $region8
    $region5: #{tpu_custom_call.1} parent=1 // loop_body
      %s22 = ssub.s32 %s17, 1
      %s23 = ssub.s32 %s17, 2
      %s30 = sadd.s32 1, %s25
      %p31 = scmp.ge.s32.totalorder %s30, 1
      %s32 = scalar_select %p31, 0, %s30
      %s33 = sadd.s32 1, %s24
      %s34 = scalar_select %p31, %s33, %s24
      %p35 = scmp.ge.s32.totalorder %s34, 2
      %s36 = scalar_select %p35, 0, %s34
      %s37 = sadd.s32 %s24, %s25
      %s38 = sadd.s32 %s36, %s32
      %s39 = ssub.s32 %s37, %s38
      %p40 = scmp.eq.s32.totalorder %s39, 0
      %s42 = sadd.s32 %s41, 1
      %s43 = scalar_select %p40, %s41, %s42
      %p46 = pneg %p40
      %p47 = scmp.eq.s32.totalorder %s17, 1
      %p48 = por %p46, %p47
      %p49 = scmp.ne.s32.totalorder %s41, %s44
      %p50 = scmp.eq.s32.totalorder %s17, 0
      %p51 = por %p49, %p50
      %p52 = scmp.ne.s32.totalorder %s41, %s44
      %p53 = scmp.eq.s32.totalorder %s22, 1
      %p54 = por %p52, %p53
      %p55 = scmp.ne.s32.totalorder %s44, %s45
      %p56 = scmp.eq.s32.totalorder %s22, 0
      %p57 = por %p55, %p56
      %p58 = scmp.ne.s32.totalorder %s44, %s45
      %p59 = scmp.eq.s32.totalorder %s23, 1
      %p60 = por %p58, %p59
      %p62 = scmp.ne.s32.totalorder %s45, %s61
      %p63 = scmp.eq.s32.totalorder %s23, 0
      %p64 = por %p62, %p63
      %s65 = sadd.s32 %s24, %s25
      %s66 = sadd.s32 %s36, %s32
      %s67 = ssub.s32 %s65, %s66
      %p68 = scmp.eq.s32.totalorder %s67, 0
      %s70 = sadd.s32 %s69, 1
      %s71 = scalar_select %p68, %s69, %s70
      %p74 = pneg %p68
      %p75 = scmp.eq.s32.totalorder %s17, 1
      %p76 = por %p74, %p75
      %p77 = scmp.ne.s32.totalorder %s69, %s72
      %p78 = scmp.eq.s32.totalorder %s17, 0
      %p79 = por %p77, %p78
      %p80 = scmp.ne.s32.totalorder %s69, %s72
      %p81 = scmp.eq.s32.totalorder %s22, 1
      %p82 = por %p80, %p81
      %p83 = scmp.ne.s32.totalorder %s72, %s73
      %p84 = scmp.eq.s32.totalorder %s22, 0
      %p85 = por %p83, %p84
      %p86 = scmp.ne.s32.totalorder %s72, %s73
      %p87 = scmp.eq.s32.totalorder %s23, 1
      %p88 = por %p86, %p87
      %p90 = scmp.ne.s32.totalorder %s73, %s89
      %p91 = scmp.eq.s32.totalorder %s23, 0
      %p92 = por %p90, %p91
      %s93 = ssub.s32 %s24, %s36
      %p94 = scmp.eq.s32.totalorder %s93, 0
      %s96 = sadd.s32 %s95, 1
      %s97 = scalar_select %p94, %s95, %s96
      %p100 = pneg %p94
      %p101 = scmp.eq.s32.totalorder %s17, 1
      %p102 = por %p100, %p101
      %p103 = scmp.ne.s32.totalorder %s95, %s98
      %p104 = scmp.eq.s32.totalorder %s17, 0
      %p105 = por %p103, %p104
      %p106 = scmp.ne.s32.totalorder %s95, %s98
      %p107 = scmp.eq.s32.totalorder %s22, 1
      %p108 = por %p106, %p107
      %p109 = scmp.ne.s32.totalorder %s98, %s99
      %p110 = scmp.eq.s32.totalorder %s22, 0
      %p111 = por %p109, %p110
      %p112 = scmp.ne.s32.totalorder %s98, %s99
      %p113 = scmp.eq.s32.totalorder %s23, 1
      %p114 = por %p112, %p113
      %p116 = scmp.ne.s32.totalorder %s99, %s115
      %p117 = scmp.eq.s32.totalorder %s23, 0
      %p118 = por %p116, %p117
      %p119 = scmp.le.s32.totalorder 1, %s17
      %p120 = scmp.lt.s32.totalorder %s17, 3
      %p121 = pnand %p119, %p120
      %p122 = pneg %p121
      // Predicated region
      $region9: #{tpu_custom_call.1} parent=5 // pred_check
        _
      $region10: #{tpu_custom_call.1} parent=5 // pred_check_branch
        %124 = sbr.rel (%p121) target = $region12
      $region11: #{tpu_custom_call.1} parent=5 // pred_region
        %s125 = ssub.s32 %s17, 1
      $region12: #{tpu_custom_call.1} parent=5 // pred_fallthru
        _
      %p126 = scmp.lt.s32.totalorder %s17, 2
      // Predicated region
      $region13: #{tpu_custom_call.1} parent=5 // pred_check
        %p127 = pneg %p126
      $region14: #{tpu_custom_call.1} parent=5 // pred_check_branch
        %129 = sbr.rel (%p127) target = $region16
      $region15: #{tpu_custom_call.1} parent=5 // pred_region
        // Predicated region
        $region17: #{tpu_custom_call.1} parent=15 // pred_check
          %p130 = pneg %p51
        $region18: #{tpu_custom_call.1} parent=15 // pred_check_branch
          %132 = sbr.rel (%p130) target = $region20
        $region19: #{tpu_custom_call.1} parent=15 // pred_region
          %s133 = sand.u32 %s41, 1
          %s134 = scalar_lea.sflag [#allocation3], %s133
          %s135 = sand.u32 %s41, 1
          %s136 = smul.addr %s135, 32
          %s137 = scalar_lea.vmem [#allocation2], %s136
          %s138 = sadd.s32 %s24, %s25
          %s140 = ssub.s32 512, 512
          %141 = vsyncadd %s134, %s140
          %s142 = smul.addr %s138, 128
          %s143 = scalar_lea.hbm %s0, %s142
          %s144 = sshll.u32 %s137, 4
          %s145 = int_to_ptr.vmem [resolvable:$true] %s144
          %150 = dma.hbm_to_vmem [thread:$0]  %s143, 512, %s145, %s134, 256, 128, 8
        $region20: #{tpu_custom_call.1} parent=15 // pred_fallthru
          _
        // Predicated region
        $region21: #{tpu_custom_call.1} parent=15 // pred_check
          %p151 = pneg %p79
        $region22: #{tpu_custom_call.1} parent=15 // pred_check_branch
          %153 = sbr.rel (%p151) target = $region24
        $region23: #{tpu_custom_call.1} parent=15 // pred_region
          %s154 = sand.u32 %s69, 1
          %s155 = scalar_lea.sflag [#allocation6], %s154
          %s156 = sand.u32 %s69, 1
          %s157 = smul.addr %s156, 32
          %s158 = scalar_lea.vmem [#allocation5], %s157
          %s159 = sadd.s32 %s24, %s25
          %s161 = ssub.s32 512, 512
          %162 = vsyncadd %s155, %s161
          %s163 = smul.addr %s159, 128
          %s164 = scalar_lea.hbm %s1, %s163
          %s165 = sshll.u32 %s158, 4
          %s166 = int_to_ptr.vmem [resolvable:$true] %s165
          %171 = dma.hbm_to_vmem [thread:$0]  %s164, 512, %s166, %s155, 256, 128, 8
        $region24: #{tpu_custom_call.1} parent=15 // pred_fallthru
          _
      $region16: #{tpu_custom_call.1} parent=5 // pred_fallthru
        _
      %p172 = scmp.le.s32.totalorder 1, %s17
      %p173 = scmp.lt.s32.totalorder %s17, 3
      %p174 = pnand %p172, %p173
      %p175 = pneg %p174
      // Predicated region
      $region25: #{tpu_custom_call.1} parent=5 // pred_check
        _
      $region26: #{tpu_custom_call.1} parent=5 // pred_check_branch
        %177 = sbr.rel (%p174) target = $region28
      $region27: #{tpu_custom_call.1} parent=5 // pred_region
        %s178 = ssub.s32 %s17, 1
        %s179 = sand.u32 %s44, 1
        %s180 = scalar_lea.sflag [#allocation3], %s179
        %s181 = sand.u32 %s44, 1
        %s182 = smul.addr %s181, 32
        %s183 = scalar_lea.vmem [#allocation2], %s182
        // Predicated region
        $region29: #{tpu_custom_call.1} parent=27 // pred_check
          %p184 = pneg %p57
        $region30: #{tpu_custom_call.1} parent=27 // pred_check_branch
          %186 = sbr.rel (%p184) target = $region32
        $region31: #{tpu_custom_call.1} parent=27 // pred_region
          %187 = dma.done %s180, 512
        $region32: #{tpu_custom_call.1} parent=27 // pred_fallthru
          _
        %s188 = sand.u32 %s72, 1
        %s189 = scalar_lea.sflag [#allocation6], %s188
        %s190 = sand.u32 %s72, 1
        %s191 = smul.addr %s190, 32
        %s192 = scalar_lea.vmem [#allocation5], %s191
        // Predicated region
        $region33: #{tpu_custom_call.1} parent=27 // pred_check
          %p193 = pneg %p85
        $region34: #{tpu_custom_call.1} parent=27 // pred_check_branch
          %195 = sbr.rel (%p193) target = $region36
        $region35: #{tpu_custom_call.1} parent=27 // pred_region
          %196 = dma.done %s189, 512
        $region36: #{tpu_custom_call.1} parent=27 // pred_fallthru
          _
        %s197 = sand.u32 %s44, 1
        %s198 = scalar_lea.sflag [#allocation3], %s197
        %s199 = sand.u32 %s44, 1
        %s200 = smul.addr %s199, 32
        %s201 = scalar_lea.vmem [#allocation2], %s200
        %p202 = pneg %p57
        %p203 = pneg %p54
        %s204 = sand.u32 %s72, 1
        %s205 = scalar_lea.sflag [#allocation6], %s204
        %s206 = sand.u32 %s72, 1
        %s207 = smul.addr %s206, 32
        %s208 = scalar_lea.vmem [#allocation5], %s207
        %p209 = pneg %p85
        %p210 = pneg %p82
        %p211 = pneg %p111
        %p212 = pneg %p108
        %s213 = sand.u32 %s98, 1
        %s214 = scalar_lea.sflag [#allocation4], %s213
        %s215 = sand.u32 %s98, 1
        %s216 = smul.addr %s215, 8
        %s217 = scalar_lea.vmem [#allocation7], %s216
        %s218 = sadd.s32 %s26, %s27
        %s219 = sadd.s32 %s26, %s27
        %p220 = scmp.eq.s32.totalorder %s27, 0
        // Predicated region
        $region37: #{tpu_custom_call.1} parent=27 // pred_check
          %p221 = pneg %p220
        $region38: #{tpu_custom_call.1} parent=27 // pred_check_branch
          %223 = sbr.rel (%p221) target = $region40
        $region39: #{tpu_custom_call.1} parent=27 // pred_region
          %224 = vst [vmem:[%s217] sm:$0xff] 0.0
        $region40: #{tpu_custom_call.1} parent=27 // pred_fallthru
          _
        %v225 = vld [vmem:[%s183] sm:$0xff]
        %v226 = vld [vmem:[%s183 + $0x8] sm:$0xff]
        %v227 = vld [vmem:[%s183 + $0x10] sm:$0xff]
        %v228 = vld [vmem:[%s183 + $0x18] sm:$0xff]
        %v229 = vld [vmem:[%s192] sm:$0xff]
        %v230 = vld [vmem:[%s192 + $0x8] sm:$0xff]
        %v231 = vld [vmem:[%s192 + $0x10] sm:$0xff]
        %v232 = vld [vmem:[%s192 + $0x18] sm:$0xff]
        %v233 = vsub.f32 %v225, %v229
        %v234 = vsub.f32 %v226, %v230
        %v235 = vsub.f32 %v227, %v231
        %v236 = vsub.f32 %v228, %v232
        %v237 = vsub.f32 %v235, %v233
        %v238 = vsub.f32 %v236, %v234
        %v239 = vmul.f32 %v233, %v233
        %v240 = vmul.f32 %v234, %v234
        %v241 = vadd.f32 %v239, %v240
        %v242 = vmul.f32 %v237, %v237
        %v243 = vadd.f32 %v241, %v242
        %v244 = vmul.f32 %v238, %v238
        %v245 = vadd.f32 %v243, %v244
        %v246 = vld [vmem:[%s217] sm:$0xff]
        %v247 = vadd.f32 %v245, 0.0
        %v248 = vadd.f32 %v246, %v247
        %249 = vst [vmem:[%s217] sm:$0xff] %v248
        %s250 = sand.u32 %s98, 1
        %s251 = scalar_lea.sflag [#allocation4], %s250
        %s252 = sand.u32 %s98, 1
        %s253 = smul.addr %s252, 8
        %s254 = scalar_lea.vmem [#allocation7], %s253
        // Predicated region
        $region41: #{tpu_custom_call.1} parent=27 // pred_check
          %p255 = pneg %p108
        $region42: #{tpu_custom_call.1} parent=27 // pred_check_branch
          %257 = sbr.rel (%p255) target = $region44
        $region43: #{tpu_custom_call.1} parent=27 // pred_region
          %s259 = ssub.s32 128, 128
          %260 = vsyncadd %s251, %s259
          %s261 = smul.addr %s26, 128
          %s262 = scalar_lea.hbm %s2, %s261
          %s264 = sshll.u32 %s254, 4
          %s265 = int_to_ptr.vmem [resolvable:$true] %s264
          %267 = dma.vmem_to_hbm [thread:$0]  %s265, 128, %s262, %s251
        $region44: #{tpu_custom_call.1} parent=27 // pred_fallthru
          _
      $region28: #{tpu_custom_call.1} parent=5 // pred_fallthru
        _
      %p268 = scmp.le.s32.totalorder 2, %s17
      // Predicated region
      $region45: #{tpu_custom_call.1} parent=5 // pred_check
        %p269 = pneg %p268
      $region46: #{tpu_custom_call.1} parent=5 // pred_check_branch
        %271 = sbr.rel (%p269) target = $region48
      $region47: #{tpu_custom_call.1} parent=5 // pred_region
        %s272 = ssub.s32 %s17, 2
        // Predicated region
        $region49: #{tpu_custom_call.1} parent=47 // pred_check
          %p273 = pneg %p114
        $region50: #{tpu_custom_call.1} parent=47 // pred_check_branch
          %275 = sbr.rel (%p273) target = $region52
        $region51: #{tpu_custom_call.1} parent=47 // pred_region
          %s276 = sand.u32 %s99, 1
          %s277 = scalar_lea.sflag [#allocation4], %s276
          %s278 = sand.u32 %s99, 1
          %s279 = smul.addr %s278, 8
          %s280 = scalar_lea.vmem [#allocation7], %s279
          %281 = dma.done %s277, 128
        $region52: #{tpu_custom_call.1} parent=47 // pred_fallthru
          _
      $region48: #{tpu_custom_call.1} parent=5 // pred_fallthru
        _
    $region6: #{tpu_custom_call.1} parent=1 // loop_footer
      %s21 = sadd.s32 1, %s17
    $region7: #{tpu_custom_call.1} parent=1 // loop_footer_branch
      %16 = sbr.rel target = $region3
    $region8: #{tpu_custom_call.1} parent=1 // loop_exit
      _
    %282 = vsyncpa [#allocation3], 1
    %s283 = scalar_lea.sflag [#allocation3], 1
    %284 = vsyncpa %s283, 1
    %285 = vsyncpa [#allocation6], 1
    %s286 = scalar_lea.sflag [#allocation6], 1
    %287 = vsyncpa %s286, 1
    %288 = vsyncpa [#allocation4], 1
    %s289 = scalar_lea.sflag [#allocation4], 1
    %290 = vsyncpa %s289, 1

</llo_original>
